<compile_context>
chip_gen: v6e
topology: v6e:2x2x1
jax: 0.10.0
libtpu: 0.0.40
codegen_flags: <defaults>
</compile_context>

<pallas_src>
import jax
import jax.numpy as jnp
from jax.experimental import pallas as pl
from jax.experimental.pallas import tpu as pltpu

EPSILON = 1e-05


def _adain_kernel(x_ref, y_ref, o_ref):
    # x_ref / y_ref / o_ref: (TR, HW) tiles in VMEM; reduce over the last axis.
    x = x_ref[...].astype(jnp.float32)
    y = y_ref[...].astype(jnp.float32)
    hw = x.shape[-1]
    inv_hw = 1.0 / hw
    inv_hw_m1 = 1.0 / (hw - 1)  # unbiased divisor (block covers the full H*W)

    # One-pass statistics: sum and sum-of-squares per row, accumulated in f32.
    sum_x = jnp.sum(x, axis=-1, keepdims=True)
    sumsq_x = jnp.sum(x * x, axis=-1, keepdims=True)
    mean_x = sum_x * inv_hw
    var_x = (sumsq_x - sum_x * mean_x) * inv_hw_m1

    sum_y = jnp.sum(y, axis=-1, keepdims=True)
    sumsq_y = jnp.sum(y * y, axis=-1, keepdims=True)
    mean_y = sum_y * inv_hw
    var_y = (sumsq_y - sum_y * mean_y) * inv_hw_m1

    # Literal reproduction of the reference forward (var/mean names swapped):
    #   out = (x - var_x) / sqrt(mean_x + eps) * sqrt(mean_y + eps) + var_y
    # Precompute per-row scale/shift so the big-tile apply is a single FMA;
    # rsqrt/sqrt go to the EUP slot.
    scale = jax.lax.rsqrt(mean_x + EPSILON) * jnp.sqrt(mean_y + EPSILON)
    shift = var_y - var_x * scale
    o_ref[...] = (x * scale + shift).astype(o_ref.dtype)


def adain(x, y):
    """x, y: (N, C, H, W) arrays. Returns stylized x with the same shape/dtype."""
    assert x.shape == y.shape, "content and style must share shape"
    N, C, H, W = x.shape
    rows, hw = N * C, H * W

    x2 = x.reshape(rows, hw)
    y2 = y.reshape(rows, hw)

    itemsize = jnp.dtype(x.dtype).itemsize
    sublane = {4: 8, 2: 16, 1: 32}.get(itemsize, 8)

    # Row-tile size: keep (2 inputs + 1 output) x 2 pipeline buffers well under
    # the scoped VMEM budget on every generation (v5e/v6e/v7x, incl. v7x's
    # smaller 64 MiB physical VMEM).  ~12 MiB working set.
    budget_bytes = 12 * 1024 * 1024
    max_tr = max(sublane, budget_bytes // (6 * hw * itemsize))
    tr = min(rows, max_tr, 2048)
    tr = max(sublane, (tr // sublane) * sublane)  # (8,128)-rule: multiple of sublane

    # Pad rows so the grid divides evenly (padded rows are sliced off after).
    padded_rows = pl.cdiv(rows, tr) * tr
    if padded_rows != rows:
        pad = padded_rows - rows
        x2 = jnp.pad(x2, ((0, pad), (0, 0)))
        y2 = jnp.pad(y2, ((0, pad), (0, 0)))

    # TODO(synk): for very large H*W (rows that don't fit VMEM), add a second
    # "arbitrary" grid axis over hw with (sum, sumsq) accumulators + finalize.
    out2 = pl.pallas_call(
        _adain_kernel,
        out_shape=jax.ShapeDtypeStruct((padded_rows, hw), x.dtype),
        grid=(padded_rows // tr,),
        in_specs=[
            pl.BlockSpec((tr, hw), lambda i: (i, 0)),
            pl.BlockSpec((tr, hw), lambda i: (i, 0)),
        ],
        out_specs=pl.BlockSpec((tr, hw), lambda i: (i, 0)),
        compiler_params=pltpu.CompilerParams(
            dimension_semantics=("parallel",),   # rows independent; use both TCs on v7x
            vmem_limit_bytes=32 * 1024 * 1024,
        ),
    )(x2, y2)

    if padded_rows != rows:
        out2 = out2[:rows]
    return out2.reshape(N, C, H, W)


def _reference(x, y):
    # Pure-JAX replica of the (name-swapped) PyTorch forward, for verification.
    def var_mean(a):
        m = jnp.mean(a, axis=(2, 3), keepdims=True)
        v = jnp.sum((a - m) ** 2, axis=(2, 3), keepdims=True) / (
            a.shape[2] * a.shape[3] - 1
        )
        return v, m  # torch.var_mean order: (var, mean)

    x_mean, x_var = var_mean(x)  # swapped names, exactly as in the module
    y_mean, y_var = var_mean(y)
    normalized_x = (x - x_mean) / jnp.sqrt(x_var + EPSILON)
    return normalized_x * jnp.sqrt(y_var + EPSILON) + y_mean


if __name__ == "__main__":
    key = jax.random.PRNGKey(0)
    kx, ky = jax.random.split(key)
    N, C, H, W = 2, 4, 16, 16
    # Positive per-instance means so the (faithfully reproduced) sqrt-of-mean
    # in the original module stays real-valued (no NaN).
    x = jax.random.normal(kx, (N, C, H, W), dtype=jnp.float32) * 0.5 + 2.0
    y = jax.random.normal(ky, (N, C, H, W), dtype=jnp.float32) * 0.3 + 1.5

    out = adain(x, y)
    jax.block_until_ready(out)

    ref = _reference(x, y)
    assert out.shape == (N, C, H, W)
    assert bool(jnp.isfinite(out).all()), "non-finite output"
    assert jnp.allclose(out, ref, atol=1e-3, rtol=1e-3), "mismatch vs reference"

    print("KERNEL_OK")
</pallas_src>

<mosaic_0001>
module attributes {stable_mosaic.version = 11 : i64} {
  func.func @_adain_kernel(%arg0: i32, %arg1: memref<8x256xf32, #tpu.memory_space<vmem>>, %arg2: memref<8x256xf32, #tpu.memory_space<vmem>>, %arg3: memref<8x256xf32, #tpu.memory_space<vmem>>) attributes {dimension_semantics = [#tpu.dimension_semantics<parallel>], iteration_bounds = array<i64: 1>, scalar_prefetch = 0 : i64, scratch_operands = 0 : i64, tpu.core_type = #tpu.core_type<tc>, window_params = [{transform_indices = @transform_0, window_bounds = array<i64: 8, 256>}, {transform_indices = @transform_1, window_bounds = array<i64: 8, 256>}, {transform_indices = @transform_2, window_bounds = array<i64: 8, 256>}]} {
    %c0 = arith.constant 0 : index
    %c0_0 = arith.constant 0 : index
    %0 = vector.load %arg1[%c0, %c0_0] : memref<8x256xf32, #tpu.memory_space<vmem>>, vector<8x256xf32>
    %c0_1 = arith.constant 0 : index
    %c0_2 = arith.constant 0 : index
    %1 = vector.load %arg2[%c0_1, %c0_2] : memref<8x256xf32, #tpu.memory_space<vmem>>, vector<8x256xf32>
    %cst = arith.constant dense<0.000000e+00> : vector<8xf32>
    %2 = vector.multi_reduction <add>, %0, %cst [1] : vector<8x256xf32> to vector<8xf32>
    %3 = vector.shape_cast %2 : vector<8xf32> to vector<8x1xf32>
    %4 = arith.mulf %0, %0 : vector<8x256xf32>
    %cst_3 = arith.constant dense<0.000000e+00> : vector<8xf32>
    %5 = vector.multi_reduction <add>, %4, %cst_3 [1] : vector<8x256xf32> to vector<8xf32>
    %6 = vector.shape_cast %5 : vector<8xf32> to vector<8x1xf32>
    %cst_4 = arith.constant 3.906250e-03 : f32
    %7 = vector.broadcast %cst_4 : f32 to vector<8x1xf32>
    %8 = arith.mulf %3, %7 : vector<8x1xf32>
    %9 = arith.mulf %3, %8 : vector<8x1xf32>
    %10 = arith.subf %6, %9 : vector<8x1xf32>
    %cst_5 = arith.constant 0.00392156886 : f32
    %11 = vector.broadcast %cst_5 : f32 to vector<8x1xf32>
    %12 = arith.mulf %10, %11 : vector<8x1xf32>
    %cst_6 = arith.constant dense<0.000000e+00> : vector<8xf32>
    %13 = vector.multi_reduction <add>, %1, %cst_6 [1] : vector<8x256xf32> to vector<8xf32>
    %14 = vector.shape_cast %13 : vector<8xf32> to vector<8x1xf32>
    %15 = arith.mulf %1, %1 : vector<8x256xf32>
    %cst_7 = arith.constant dense<0.000000e+00> : vector<8xf32>
    %16 = vector.multi_reduction <add>, %15, %cst_7 [1] : vector<8x256xf32> to vector<8xf32>
    %17 = vector.shape_cast %16 : vector<8xf32> to vector<8x1xf32>
    %cst_8 = arith.constant 3.906250e-03 : f32
    %18 = vector.broadcast %cst_8 : f32 to vector<8x1xf32>
    %19 = arith.mulf %14, %18 : vector<8x1xf32>
    %20 = arith.mulf %14, %19 : vector<8x1xf32>
    %21 = arith.subf %17, %20 : vector<8x1xf32>
    %cst_9 = arith.constant 0.00392156886 : f32
    %22 = vector.broadcast %cst_9 : f32 to vector<8x1xf32>
    %23 = arith.mulf %21, %22 : vector<8x1xf32>
    %cst_10 = arith.constant 9.99999974E-6 : f32
    %24 = vector.broadcast %cst_10 : f32 to vector<8x1xf32>
    %25 = arith.addf %8, %24 : vector<8x1xf32>
    %26 = math.rsqrt %25 : vector<8x1xf32>
    %cst_11 = arith.constant 9.99999974E-6 : f32
    %27 = vector.broadcast %cst_11 : f32 to vector<8x1xf32>
    %28 = arith.addf %19, %27 : vector<8x1xf32>
    %29 = math.sqrt %28 : vector<8x1xf32>
    %30 = arith.mulf %26, %29 : vector<8x1xf32>
    %31 = arith.mulf %12, %30 : vector<8x1xf32>
    %32 = arith.subf %23, %31 : vector<8x1xf32>
    %33 = vector.broadcast %30 : vector<8x1xf32> to vector<8x256xf32>
    %34 = arith.mulf %0, %33 : vector<8x256xf32>
    %35 = vector.broadcast %32 : vector<8x1xf32> to vector<8x256xf32>
    %36 = arith.addf %34, %35 : vector<8x256xf32>
    %c0_12 = arith.constant 0 : index
    %c0_13 = arith.constant 0 : index
    %37 = vector.load %arg3[%c0_12, %c0_13] : memref<8x256xf32, #tpu.memory_space<vmem>>, vector<8x256xf32>
    tpu.vector_store %arg3[%c0_12, %c0_13], %36 {strides = array<i32>} : memref<8x256xf32, #tpu.memory_space<vmem>>, vector<8x256xf32>,
    return
  }
  func.func @transform_0(%arg0: i32) -> (i32, i32) {
    %c0_i32 = arith.constant 0 : i32
    %c0_i32_0 = arith.constant 0 : i32
    return %arg0, %c0_i32 : i32, i32
  }
  func.func @transform_1(%arg0: i32) -> (i32, i32) {
    %c0_i32 = arith.constant 0 : i32
    %c0_i32_0 = arith.constant 0 : i32
    return %arg0, %c0_i32 : i32, i32
  }
  func.func @transform_2(%arg0: i32) -> (i32, i32) {
    %c0_i32 = arith.constant 0 : i32
    %c0_i32_0 = arith.constant 0 : i32
    return %arg0, %c0_i32 : i32, i32
  }
}

</mosaic_0001>

<llo_original>
// kernel: tpu_custom_call.1
$region0: #{tpu_custom_call.1}
  #allocation0 [shape = 'u32[]', space=smem, size = 0x4, offset = 0x4, fixed_abs, tag = 'smem constant byte address 0x4 - core index']
  #allocation1 [shape = 'u32[144,128]{1,0:T(1,128)}', space=vmem, size = 0x12000, scoped, tag = 'internal scratch']
  %s0 = inlined_call_operand.hbm [shape: f32[8,256], index: 0, kind: input, shape index: {}]
  %s1 = inlined_call_operand.hbm [shape: f32[8,256], index: 1, kind: input, shape index: {}]
  %s2 = inlined_call_operand.hbm [shape: f32[8,256], index: 2, kind: output, shape index: {}]
  %s3 = sld [smem:[#allocation0]]
  $region26: #{tpu_custom_call.1} parent=0
    _
  %s5 = ssub.s32 1, %s3
  %s6 = scalar_select 0, %s5, %s3
  $region1: #{tpu_custom_call.1} parent=0
    #allocation2 [shape = 'u8[8192]{0}', space=vmem, size = 0x2000, scoped, tag = 'input window, operand 0, single buffered']
    #allocation3 [shape = 's32[1]{0}', space=sflag, size = 0x4, scoped, tag = 'scoped memory for tpu_custom_call.1']
    #allocation4 [shape = 's32[1]{0}', space=sflag, size = 0x4, scoped, tag = 'scoped memory for tpu_custom_call.1']
    #allocation5 [shape = 'u8[8192]{0}', space=vmem, size = 0x2000, scoped, tag = 'input window, operand 1, single buffered']
    #allocation6 [shape = 's32[1]{0}', space=sflag, size = 0x4, scoped, tag = 'scoped memory for tpu_custom_call.1']
    #allocation7 [shape = 'u8[8192]{0}', space=vmem, size = 0x2000, scoped, tag = 'output window, operand 0, single buffered']
    %7 = vsyncpa [#allocation3], 0
    %8 = vsyncpa [#allocation6], 0
    %9 = vsyncpa [#allocation4], 0
    // Predicated region
    $region2: #{tpu_custom_call.1} parent=1 // pred_check
      _
    $region3: #{tpu_custom_call.1} parent=1 // pred_check_branch
      %11 = sbr.rel (0) target = $region5
    $region4: #{tpu_custom_call.1} parent=1 // pred_region
      %s13 = ssub.s32 256, 256
      %14 = vsyncadd [#allocation3], %s13
      %s16 = sshll.u32 [#allocation2], 4
      %s17 = int_to_ptr.vmem [resolvable:$true] %s16
      %19 = dma.hbm_to_vmem [thread:$0]  %s0, 256, %s17, [#allocation3]
    $region5: #{tpu_custom_call.1} parent=1 // pred_fallthru
      _
    // Predicated region
    $region6: #{tpu_custom_call.1} parent=1 // pred_check
      _
    $region7: #{tpu_custom_call.1} parent=1 // pred_check_branch
      %21 = sbr.rel (0) target = $region9
    $region8: #{tpu_custom_call.1} parent=1 // pred_region
      %s23 = ssub.s32 256, 256
      %24 = vsyncadd [#allocation6], %s23
      %s26 = sshll.u32 [#allocation5], 4
      %s27 = int_to_ptr.vmem [resolvable:$true] %s26
      %29 = dma.hbm_to_vmem [thread:$0]  %s1, 256, %s27, [#allocation6]
    $region9: #{tpu_custom_call.1} parent=1 // pred_fallthru
      _
    // Predicated region
    $region10: #{tpu_custom_call.1} parent=1 // pred_check
      _
    $region11: #{tpu_custom_call.1} parent=1 // pred_check_branch
      %31 = sbr.rel (0) target = $region13
    $region12: #{tpu_custom_call.1} parent=1 // pred_region
      %32 = dma.done [#allocation3], 256
    $region13: #{tpu_custom_call.1} parent=1 // pred_fallthru
      _
    // Predicated region
    $region14: #{tpu_custom_call.1} parent=1 // pred_check
      _
    $region15: #{tpu_custom_call.1} parent=1 // pred_check_branch
      %34 = sbr.rel (0) target = $region17
    $region16: #{tpu_custom_call.1} parent=1 // pred_region
      %35 = dma.done [#allocation6], 256
    $region17: #{tpu_custom_call.1} parent=1 // pred_fallthru
      _
    %v36 = vld [vmem:[#allocation2] sm:$0xff]
    %v37 = vld [vmem:[#allocation2 + $0x8] sm:$0xff]
    %v38 = vld [vmem:[#allocation5] sm:$0xff]
    %v39 = vld [vmem:[#allocation5 + $0x8] sm:$0xff]
    %v40 = vadd.f32 %v36, %v37
    %41 = vadd.xlane.f32.xlu0 %v40
    %v42 = vpop.xlane.xlu0 %41
    %v43 = vmul.f32 %v36, %v36
    %v44 = vmul.f32 %v37, %v37
    %v45 = vadd.f32 %v43, %v44
    %46 = vadd.xlane.f32.xlu0 %v45
    %v47 = vpop.xlane.xlu0 %46
    %v48 = vmul.f32 %v42, 0.00390625
    %v49 = vmul.f32 %v42, %v48
    %v50 = vsub.f32 %v47, %v49
    %v51 = vmul.f32 %v50, 0.003921569
    %v52 = vadd.f32 %v38, %v39
    %53 = vadd.xlane.f32.xlu0 %v52
    %v54 = vpop.xlane.xlu0 %53
    %v55 = vmul.f32 %v38, %v38
    %v56 = vmul.f32 %v39, %v39
    %v57 = vadd.f32 %v55, %v56
    %58 = vadd.xlane.f32.xlu0 %v57
    %v59 = vpop.xlane.xlu0 %58
    %v60 = vmul.f32 %v54, 0.00390625
    %v61 = vmul.f32 %v54, %v60
    %v62 = vsub.f32 %v59, %v61
    %v63 = vmul.f32 %v62, 0.003921569
    %v64 = vadd.f32 %v48, 1e-05
    %v65 = vrsqrt.pop %v64
    %v66 = vadd.f32 %v60, 1e-05
    %v67 = vrsqrt.pop %v66
    %v68 = vmul.f32 %v66, %v67
    %vm69 = vcmp.eq.f32.partialorder %v66, inf
    %v70 = vsel %vm69, %v66, %v68
    %vm71 = vcmp.eq.f32.partialorder %v66, 0.0
    %v72 = vand.u32 %v66, 2147483648
    %v73 = vsel %vm71, %v72, %v70
    %v74 = vmul.f32 %v65, %v73
    %v75 = vmul.f32 %v51, %v74
    %v76 = vsub.f32 %v63, %v75
    %v77 = vmul.f32 %v36, %v74
    %v78 = vmul.f32 %v37, %v74
    %v79 = vadd.f32 %v77, %v76
    %v80 = vadd.f32 %v78, %v76
    %81 = vst [vmem:[#allocation7] sm:$0xff] %v79
    %82 = vst [vmem:[#allocation7 + $0x8] sm:$0xff] %v80
    // Predicated region
    $region18: #{tpu_custom_call.1} parent=1 // pred_check
      _
    $region19: #{tpu_custom_call.1} parent=1 // pred_check_branch
      %84 = sbr.rel (0) target = $region21
    $region20: #{tpu_custom_call.1} parent=1 // pred_region
      %s86 = ssub.s32 256, 256
      %87 = vsyncadd [#allocation4], %s86
      %s89 = sshll.u32 [#allocation7], 4
      %s90 = int_to_ptr.vmem [resolvable:$true] %s89
      %92 = dma.vmem_to_hbm [thread:$0]  %s90, 256, %s2, [#allocation4]
    $region21: #{tpu_custom_call.1} parent=1 // pred_fallthru
      _
    // Predicated region
    $region22: #{tpu_custom_call.1} parent=1 // pred_check
      _
    $region23: #{tpu_custom_call.1} parent=1 // pred_check_branch
      %94 = sbr.rel (0) target = $region25
    $region24: #{tpu_custom_call.1} parent=1 // pred_region
      %95 = dma.done [#allocation4], 256
    $region25: #{tpu_custom_call.1} parent=1 // pred_fallthru
      _
    %96 = vsyncpa [#allocation3], 1
    %97 = vsyncpa [#allocation6], 1
    %98 = vsyncpa [#allocation4], 1

</llo_original>
